<compile_context>
chip_gen: v6e
topology: v6e:2x2x1
jax: 0.10.0
libtpu: 0.0.40
codegen_flags: <defaults>
</compile_context>

<pallas_src>
import functools

import jax
import jax.numpy as jnp
from jax.experimental import pallas as pl
from jax.experimental.pallas import tpu as pltpu

EPS = 1e-5
LANE = 128           # lane alignment; on v6e/v7x, 256 can better fill the 256x256 MXU
SUBLANE_BF16 = 16    # bf16 sublane pack


def _round_up(n, m):
    return ((n + m - 1) // m) * m


# --------------------------------------------------------------------------- #
# Kernel
# --------------------------------------------------------------------------- #
def _generator_kernel(x_ref,
                      w1_ref, g1_ref, be1_ref,
                      w2_ref, g2_ref, be2_ref,
                      w3_ref, b3_ref,
                      o_ref, *, b_true):
    b_pad = x_ref.shape[0]
    inv_b = jnp.float32(1.0 / b_true)
    need_row_mask = b_pad > b_true
    if need_row_mask:
        row_ok = jax.lax.broadcasted_iota(jnp.int32, (b_pad, 1), 0) < b_true

    def bn_relu(h, g, be):
        # Single-pass training-mode BN fused with ReLU:
        #   mean = sum / B_true, var = sumsq / B_true - mean^2 (biased)
        #   y    = max(h * scale + (beta - mean * scale), 0)
        # Padded rows are exactly zero on entry, so dividing by the true batch
        # size keeps the statistics exact without masked reductions.
        s = jnp.sum(h, axis=0, keepdims=True)
        sq = jnp.sum(h * h, axis=0, keepdims=True)
        mean = s * inv_b
        var = sq * inv_b - mean * mean
        scale = jax.lax.rsqrt(var + EPS) * g
        shift = be - mean * scale
        y = jnp.maximum(h * scale + shift, 0.0)
        if need_row_mask:
            # shift may be nonzero -> re-zero padded rows so the next layer's
            # batch statistics stay exact.
            y = jnp.where(row_ok, y, 0.0)
        return y

    # ---- Linear 1 (bias cancelled by train-mode BN) + BN + ReLU ----
    h = jnp.dot(x_ref[...], w1_ref[...], preferred_element_type=jnp.float32)
    h = bn_relu(h, g1_ref[...], be1_ref[...])

    # ---- Linear 2 (bias cancelled) + BN + ReLU ----
    h = jnp.dot(h.astype(jnp.bfloat16), w2_ref[...],
                preferred_element_type=jnp.float32)
    h = bn_relu(h, g2_ref[...], be2_ref[...])

    # ---- Linear 3 (output head keeps its bias) ----
    o = jnp.dot(h.astype(jnp.bfloat16), w3_ref[...],
                preferred_element_type=jnp.float32)
    o_ref[...] = (o + b3_ref[...]).astype(o_ref.dtype)


# --------------------------------------------------------------------------- #
# One-time parameter packing (hoisted out of the per-forward path)
# --------------------------------------------------------------------------- #
def pack_params(params):
    """Pad weights to lane multiples and cast matmul operands to bf16, once."""
    input_dim, hidden_dim = params["w1"].shape
    output_dim = params["w3"].shape[1]
    din_p = _round_up(input_dim, LANE)
    h_p = _round_up(hidden_dim, LANE)
    dout_p = _round_up(output_dim, LANE)

    def pad2(a, rows, cols, dtype=None):
        if dtype is not None:
            a = a.astype(dtype)
        return jnp.pad(a, ((0, rows - a.shape[0]), (0, cols - a.shape[1])))

    # Zero padding keeps the math exact: padded input features hit zero weight
    # rows; padded hidden/output features stay identically zero through BN
    # (gamma/beta padded with 0) and are sliced off at the end.
    packed = {
        "w1": pad2(params["w1"], din_p, h_p, jnp.bfloat16),
        "g1": pad2(params["g1"], 1, h_p),
        "be1": pad2(params["be1"], 1, h_p),
        "w2": pad2(params["w2"], h_p, h_p, jnp.bfloat16),
        "g2": pad2(params["g2"], 1, h_p),
        "be2": pad2(params["be2"], 1, h_p),
        "w3": pad2(params["w3"], h_p, dout_p, jnp.bfloat16),
        "b3": pad2(params["b3"], 1, dout_p),
    }
    return packed


def _vmem_limit_bytes(working_set_bytes):
    phys = 64 * 1024 * 1024  # conservative default = v7x per-TC VMEM
    try:
        info = pltpu.get_tpu_info()
        phys = int(getattr(info, "vmem_capacity_bytes", phys) or phys)
    except Exception:
        pass
    want = max(2 * int(working_set_bytes) + (8 << 20), 32 << 20)
    return int(min(want, phys * 7 // 8))


# --------------------------------------------------------------------------- #
# Forward wrapper
# --------------------------------------------------------------------------- #
@functools.partial(jax.jit, static_argnames=("output_dim",))
def generator_forward(x, packed, *, output_dim):
    """x: (B, input_dim) float32.  packed: output of pack_params."""
    B, input_dim = x.shape
    din_p, h_p = packed["w1"].shape
    dout_p = packed["w3"].shape[1]
    b_pad = _round_up(B, SUBLANE_BF16)

    # Only the activation is padded/cast per call; weights are pre-packed.
    x_p = jnp.pad(x.astype(jnp.bfloat16),
                  ((0, b_pad - B), (0, din_p - input_dim)))

    args = (x_p, packed["w1"], packed["g1"], packed["be1"],
            packed["w2"], packed["g2"], packed["be2"],
            packed["w3"], packed["b3"])

    in_bytes = sum(int(a.size) * a.dtype.itemsize for a in args)
    out_bytes = b_pad * dout_p * 4
    act_bytes = 3 * b_pad * h_p * 4      # f32 activations + bf16 operand copies (rough)
    flops = 2 * b_pad * (din_p * h_p + h_p * h_p + h_p * dout_p)
    cost = pl.CostEstimate(flops=flops, transcendentals=2 * h_p,
                           bytes_accessed=in_bytes + out_bytes)

    vmem = pl.BlockSpec(memory_space=pltpu.MemorySpace.VMEM)
    out_p = pl.pallas_call(
        functools.partial(_generator_kernel, b_true=B),
        out_shape=jax.ShapeDtypeStruct((b_pad, dout_p), jnp.float32),
        in_specs=[vmem] * len(args),
        out_specs=vmem,
        cost_estimate=cost,
        compiler_params=pltpu.CompilerParams(
            vmem_limit_bytes=_vmem_limit_bytes(in_bytes + out_bytes + act_bytes)),
    )(*args)
    # TODO(synk): for large B (especially on 64 MiB-VMEM v7x) switch to a
    # batch-tiled grid with two-phase BN (accumulate sum/sumsq over an
    # 'arbitrary' batch axis, then normalize), weights resident via constant
    # index_maps, and the batch axis marked 'parallel' for megacore.
    return out_p[:B, :output_dim]


# --------------------------------------------------------------------------- #
# Parameters / reference / test
# --------------------------------------------------------------------------- #
def init_params(key, input_dim, output_dim, hidden_dim):
    """Deterministic synthetic parameters matching the module's shapes (f32)."""
    ks = jax.random.split(key, 6)
    f32 = jnp.float32
    return {
        # Linear weights stored (in, out); biases/gammas/betas stored (1, dim).
        "w1": 0.02 * jax.random.normal(ks[0], (input_dim, hidden_dim), f32),
        "b1": 0.01 * jax.random.normal(ks[1], (1, hidden_dim), f32),
        "g1": jnp.ones((1, hidden_dim), f32),
        "be1": jnp.zeros((1, hidden_dim), f32),
        "w2": 0.02 * jax.random.normal(ks[2], (hidden_dim, hidden_dim), f32),
        "b2": 0.01 * jax.random.normal(ks[3], (1, hidden_dim), f32),
        "g2": jnp.ones((1, hidden_dim), f32),
        "be2": jnp.zeros((1, hidden_dim), f32),
        "w3": 0.02 * jax.random.normal(ks[4], (hidden_dim, output_dim), f32),
        "b3": 0.01 * jax.random.normal(ks[5], (1, output_dim), f32),
    }


def _reference_forward(x, p):
    """Pure-JAX f32 reference matching the PyTorch module (biases included)."""
    def bn(h, g, be):
        m = jnp.mean(h, axis=0, keepdims=True)
        v = jnp.mean((h - m) ** 2, axis=0, keepdims=True)
        return (h - m) / jnp.sqrt(v + EPS) * g + be

    h = x @ p["w1"] + p["b1"]                        # bias present in reference;
    h = jnp.maximum(bn(h, p["g1"], p["be1"]), 0.0)   # cancelled by train-mode BN
    h = h @ p["w2"] + p["b2"]
    h = jnp.maximum(bn(h, p["g2"], p["be2"]), 0.0)
    return h @ p["w3"] + p["b3"]


if __name__ == "__main__":
    B, INPUT_DIM, HIDDEN_DIM, OUTPUT_DIM = 8, 16, 32, 16

    key = jax.random.PRNGKey(0)
    kx, kp = jax.random.split(key)
    x = jax.random.normal(kx, (B, INPUT_DIM), jnp.float32)
    params = init_params(kp, INPUT_DIM, OUTPUT_DIM, HIDDEN_DIM)

    packed = pack_params(params)                 # one-time, outside the fwd path
    packed = jax.tree_util.tree_map(jax.block_until_ready, packed)

    out = generator_forward(x, packed, output_dim=OUTPUT_DIM)
    out = jax.block_until_ready(out)

    ref = _reference_forward(x, params)
    assert out.shape == (B, OUTPUT_DIM)
    # bf16 matmul operands (f32 accumulation) + E[h^2]-mean^2 variance ->
    # tolerance loosened accordingly.
    assert jnp.allclose(out, ref, atol=3e-2, rtol=3e-2), "mismatch vs reference"

    print("KERNEL_OK")
</pallas_src>

<mosaic_0001>
module attributes {stable_mosaic.version = 11 : i64} {
  func.func @_generator_kernel(%arg0: memref<16x128xbf16, #tpu.memory_space<vmem>>, %arg1: memref<128x128xbf16, #tpu.memory_space<vmem>>, %arg2: memref<1x128xf32, #tpu.memory_space<vmem>>, %arg3: memref<1x128xf32, #tpu.memory_space<vmem>>, %arg4: memref<128x128xbf16, #tpu.memory_space<vmem>>, %arg5: memref<1x128xf32, #tpu.memory_space<vmem>>, %arg6: memref<1x128xf32, #tpu.memory_space<vmem>>, %arg7: memref<128x128xbf16, #tpu.memory_space<vmem>>, %arg8: memref<1x128xf32, #tpu.memory_space<vmem>>, %arg9: memref<16x128xf32, #tpu.memory_space<vmem>>) attributes {dimension_semantics = [], scalar_prefetch = 0 : i64, scratch_operands = 0 : i64, tpu.core_type = #tpu.core_type<tc>} {
    %0 = tpu.iota {dimensions = array<i32: 0>} : vector<16x1xi32>
    %c8_i32 = arith.constant 8 : i32
    %1 = vector.broadcast %c8_i32 : i32 to vector<16x1xi32>
    %2 = arith.cmpi slt, %0, %1 : vector<16x1xi32>
    %c0 = arith.constant 0 : index
    %c0_0 = arith.constant 0 : index
    %3 = vector.load %arg0[%c0, %c0_0] : memref<16x128xbf16, #tpu.memory_space<vmem>>, vector<16x128xbf16>
    %c0_1 = arith.constant 0 : index
    %c0_2 = arith.constant 0 : index
    %4 = vector.load %arg1[%c0_1, %c0_2] : memref<128x128xbf16, #tpu.memory_space<vmem>>, vector<128x128xbf16>
    %cst = arith.constant dense<0.000000e+00> : vector<16x128xf32>
    %5 = tpu.matmul %3, %4, %cst {dimension_numbers = #tpu.dot_dimension_numbers<[1], [0], [0], [1], [0, 0, 1, 1], [], []>} : vector<16x128xbf16>, vector<128x128xbf16>, vector<16x128xf32> -> vector<16x128xf32>
    %c0_3 = arith.constant 0 : index
    %c0_4 = arith.constant 0 : index
    %6 = vector.load %arg2[%c0_3, %c0_4] : memref<1x128xf32, #tpu.memory_space<vmem>>, vector<1x128xf32>
    %c0_5 = arith.constant 0 : index
    %c0_6 = arith.constant 0 : index
    %7 = vector.load %arg3[%c0_5, %c0_6] : memref<1x128xf32, #tpu.memory_space<vmem>>, vector<1x128xf32>
    %cst_7 = arith.constant dense<0.000000e+00> : vector<128xf32>
    %8 = vector.multi_reduction <add>, %5, %cst_7 [0] : vector<16x128xf32> to vector<128xf32>
    %9 = vector.shape_cast %8 : vector<128xf32> to vector<1x128xf32>
    %10 = arith.mulf %5, %5 : vector<16x128xf32>
    %cst_8 = arith.constant dense<0.000000e+00> : vector<128xf32>
    %11 = vector.multi_reduction <add>, %10, %cst_8 [0] : vector<16x128xf32> to vector<128xf32>
    %12 = vector.shape_cast %11 : vector<128xf32> to vector<1x128xf32>
    %cst_9 = arith.constant 1.250000e-01 : f32
    %13 = vector.broadcast %cst_9 : f32 to vector<1x128xf32>
    %14 = arith.mulf %9, %13 : vector<1x128xf32>
    %cst_10 = arith.constant 1.250000e-01 : f32
    %15 = vector.broadcast %cst_10 : f32 to vector<1x128xf32>
    %16 = arith.mulf %12, %15 : vector<1x128xf32>
    %17 = arith.mulf %14, %14 : vector<1x128xf32>
    %18 = arith.subf %16, %17 : vector<1x128xf32>
    %cst_11 = arith.constant 9.99999974E-6 : f32
    %19 = vector.broadcast %cst_11 : f32 to vector<1x128xf32>
    %20 = arith.addf %18, %19 : vector<1x128xf32>
    %21 = math.rsqrt %20 : vector<1x128xf32>
    %22 = arith.mulf %21, %6 : vector<1x128xf32>
    %23 = arith.mulf %14, %22 : vector<1x128xf32>
    %24 = arith.subf %7, %23 : vector<1x128xf32>
    %25 = vector.broadcast %22 : vector<1x128xf32> to vector<16x128xf32>
    %26 = arith.mulf %5, %25 : vector<16x128xf32>
    %27 = vector.broadcast %24 : vector<1x128xf32> to vector<16x128xf32>
    %28 = arith.addf %26, %27 : vector<16x128xf32>
    %cst_12 = arith.constant 0.000000e+00 : f32
    %29 = vector.broadcast %cst_12 : f32 to vector<16x128xf32>
    %30 = arith.maximumf %28, %29 : vector<16x128xf32>
    %cst_13 = arith.constant 0.000000e+00 : f32
    %31 = vector.shape_cast %2 : vector<16x1xi1> to vector<16x1xi1>
    %32 = vector.broadcast %31 : vector<16x1xi1> to vector<16x128xi1>
    %33 = vector.broadcast %cst_13 : f32 to vector<16x128xf32>
    %34 = arith.select %32, %30, %33 : vector<16x128xi1>, vector<16x128xf32>
    %35 = arith.truncf %34 : vector<16x128xf32> to vector<16x128xbf16>
    %c0_14 = arith.constant 0 : index
    %c0_15 = arith.constant 0 : index
    %36 = vector.load %arg4[%c0_14, %c0_15] : memref<128x128xbf16, #tpu.memory_space<vmem>>, vector<128x128xbf16>
    %cst_16 = arith.constant dense<0.000000e+00> : vector<16x128xf32>
    %37 = tpu.matmul %35, %36, %cst_16 {dimension_numbers = #tpu.dot_dimension_numbers<[1], [0], [0], [1], [0, 0, 1, 1], [], []>} : vector<16x128xbf16>, vector<128x128xbf16>, vector<16x128xf32> -> vector<16x128xf32>
    %c0_17 = arith.constant 0 : index
    %c0_18 = arith.constant 0 : index
    %38 = vector.load %arg5[%c0_17, %c0_18] : memref<1x128xf32, #tpu.memory_space<vmem>>, vector<1x128xf32>
    %c0_19 = arith.constant 0 : index
    %c0_20 = arith.constant 0 : index
    %39 = vector.load %arg6[%c0_19, %c0_20] : memref<1x128xf32, #tpu.memory_space<vmem>>, vector<1x128xf32>
    %cst_21 = arith.constant dense<0.000000e+00> : vector<128xf32>
    %40 = vector.multi_reduction <add>, %37, %cst_21 [0] : vector<16x128xf32> to vector<128xf32>
    %41 = vector.shape_cast %40 : vector<128xf32> to vector<1x128xf32>
    %42 = arith.mulf %37, %37 : vector<16x128xf32>
    %cst_22 = arith.constant dense<0.000000e+00> : vector<128xf32>
    %43 = vector.multi_reduction <add>, %42, %cst_22 [0] : vector<16x128xf32> to vector<128xf32>
    %44 = vector.shape_cast %43 : vector<128xf32> to vector<1x128xf32>
    %cst_23 = arith.constant 1.250000e-01 : f32
    %45 = vector.broadcast %cst_23 : f32 to vector<1x128xf32>
    %46 = arith.mulf %41, %45 : vector<1x128xf32>
    %cst_24 = arith.constant 1.250000e-01 : f32
    %47 = vector.broadcast %cst_24 : f32 to vector<1x128xf32>
    %48 = arith.mulf %44, %47 : vector<1x128xf32>
    %49 = arith.mulf %46, %46 : vector<1x128xf32>
    %50 = arith.subf %48, %49 : vector<1x128xf32>
    %cst_25 = arith.constant 9.99999974E-6 : f32
    %51 = vector.broadcast %cst_25 : f32 to vector<1x128xf32>
    %52 = arith.addf %50, %51 : vector<1x128xf32>
    %53 = math.rsqrt %52 : vector<1x128xf32>
    %54 = arith.mulf %53, %38 : vector<1x128xf32>
    %55 = arith.mulf %46, %54 : vector<1x128xf32>
    %56 = arith.subf %39, %55 : vector<1x128xf32>
    %57 = vector.broadcast %54 : vector<1x128xf32> to vector<16x128xf32>
    %58 = arith.mulf %37, %57 : vector<16x128xf32>
    %59 = vector.broadcast %56 : vector<1x128xf32> to vector<16x128xf32>
    %60 = arith.addf %58, %59 : vector<16x128xf32>
    %cst_26 = arith.constant 0.000000e+00 : f32
    %61 = vector.broadcast %cst_26 : f32 to vector<16x128xf32>
    %62 = arith.maximumf %60, %61 : vector<16x128xf32>
    %cst_27 = arith.constant 0.000000e+00 : f32
    %63 = vector.shape_cast %2 : vector<16x1xi1> to vector<16x1xi1>
    %64 = vector.broadcast %63 : vector<16x1xi1> to vector<16x128xi1>
    %65 = vector.broadcast %cst_27 : f32 to vector<16x128xf32>
    %66 = arith.select %64, %62, %65 : vector<16x128xi1>, vector<16x128xf32>
    %67 = arith.truncf %66 : vector<16x128xf32> to vector<16x128xbf16>
    %c0_28 = arith.constant 0 : index
    %c0_29 = arith.constant 0 : index
    %68 = vector.load %arg7[%c0_28, %c0_29] : memref<128x128xbf16, #tpu.memory_space<vmem>>, vector<128x128xbf16>
    %cst_30 = arith.constant dense<0.000000e+00> : vector<16x128xf32>
    %69 = tpu.matmul %67, %68, %cst_30 {dimension_numbers = #tpu.dot_dimension_numbers<[1], [0], [0], [1], [0, 0, 1, 1], [], []>} : vector<16x128xbf16>, vector<128x128xbf16>, vector<16x128xf32> -> vector<16x128xf32>
    %c0_31 = arith.constant 0 : index
    %c0_32 = arith.constant 0 : index
    %70 = vector.load %arg8[%c0_31, %c0_32] : memref<1x128xf32, #tpu.memory_space<vmem>>, vector<1x128xf32>
    %71 = vector.broadcast %70 : vector<1x128xf32> to vector<16x128xf32>
    %72 = arith.addf %69, %71 : vector<16x128xf32>
    %c0_33 = arith.constant 0 : index
    %c0_34 = arith.constant 0 : index
    %73 = vector.load %arg9[%c0_33, %c0_34] : memref<16x128xf32, #tpu.memory_space<vmem>>, vector<16x128xf32>
    tpu.vector_store %arg9[%c0_33, %c0_34], %72 {strides = array<i32>} : memref<16x128xf32, #tpu.memory_space<vmem>>, vector<16x128xf32>,
    return
  }
}

</mosaic_0001>

<llo_original>
// kernel: generator_forward.1
$region0: #{generator_forward.1}
  #allocation0 [shape = 'u32[]', space=smem, size = 0x4, offset = 0x4, fixed_abs, tag = 'smem constant byte address 0x4 - core index']
  #allocation1 [shape = 'u32[144,128]{1,0:T(1,128)}', space=vmem, size = 0x12000, scoped, tag = 'internal scratch']
  %s0 = inlined_call_operand.vmem [shape: bf16[16,128], index: 0, kind: input, shape index: {}]
  %s1 = inlined_call_operand.hbm [shape: bf16[128,128], index: 1, kind: input, shape index: {}]
  %s2 = inlined_call_operand.vmem [shape: f32[1,128], index: 2, kind: input, shape index: {}]
  %s3 = inlined_call_operand.vmem [shape: f32[1,128], index: 3, kind: input, shape index: {}]
  %s4 = inlined_call_operand.hbm [shape: bf16[128,128], index: 4, kind: input, shape index: {}]
  %s5 = inlined_call_operand.vmem [shape: f32[1,128], index: 5, kind: input, shape index: {}]
  %s6 = inlined_call_operand.vmem [shape: f32[1,128], index: 6, kind: input, shape index: {}]
  %s7 = inlined_call_operand.hbm [shape: bf16[128,128], index: 7, kind: input, shape index: {}]
  %s8 = inlined_call_operand.vmem [shape: f32[1,128], index: 8, kind: input, shape index: {}]
  %s9 = inlined_call_operand.vmem [shape: f32[16,128], index: 9, kind: output, shape index: {}]
  %s10 = sld [smem:[#allocation0]]
  $region58: #{generator_forward.1} parent=0
    _
  %s12 = ssub.s32 1, %s10
  %s13 = scalar_select 0, %s12, %s10
  $region1: #{generator_forward.1} parent=0
    #allocation2 [shape = 'u8[32768]{0}', space=vmem, size = 0x8000, scoped, tag = 'input window, operand 1, single buffered']
    #allocation3 [shape = 's32[1]{0}', space=sflag, size = 0x4, scoped, tag = 'scoped memory for generator_forward.1']
    #allocation4 [shape = 'u8[32768]{0}', space=vmem, size = 0x8000, scoped, tag = 'input window, operand 4, single buffered']
    #allocation5 [shape = 's32[1]{0}', space=sflag, size = 0x4, scoped, tag = 'scoped memory for generator_forward.1']
    #allocation6 [shape = 'u8[32768]{0}', space=vmem, size = 0x8000, scoped, tag = 'input window, operand 7, single buffered']
    %14 = vsyncpa [#allocation3], 0
    %15 = vsyncpa [#allocation5], 0
    // Predicated region
    $region2: #{generator_forward.1} parent=1 // pred_check
      _
    $region3: #{generator_forward.1} parent=1 // pred_check_branch
      %17 = sbr.rel (0) target = $region5
    $region4: #{generator_forward.1} parent=1 // pred_region
      _
    $region5: #{generator_forward.1} parent=1 // pred_fallthru
      _
    // Predicated region
    $region6: #{generator_forward.1} parent=1 // pred_check
      _
    $region7: #{generator_forward.1} parent=1 // pred_check_branch
      %19 = sbr.rel (0) target = $region9
    $region8: #{generator_forward.1} parent=1 // pred_region
      %s21 = ssub.s32 1024, 1024
      %22 = vsyncadd [#allocation3], %s21
      %s23 = sshll.u32 [#allocation2], 4
      %s24 = int_to_ptr.vmem [resolvable:$true] %s23
      %29 = dma.hbm_to_vmem [thread:$0]  %s1, 1024, %s24, [#allocation3], 64, 64, 4
    $region9: #{generator_forward.1} parent=1 // pred_fallthru
      _
    // Predicated region
    $region10: #{generator_forward.1} parent=1 // pred_check
      _
    $region11: #{generator_forward.1} parent=1 // pred_check_branch
      %31 = sbr.rel (0) target = $region13
    $region12: #{generator_forward.1} parent=1 // pred_region
      _
    $region13: #{generator_forward.1} parent=1 // pred_fallthru
      _
    // Predicated region
    $region14: #{generator_forward.1} parent=1 // pred_check
      _
    $region15: #{generator_forward.1} parent=1 // pred_check_branch
      %33 = sbr.rel (0) target = $region17
    $region16: #{generator_forward.1} parent=1 // pred_region
      _
    $region17: #{generator_forward.1} parent=1 // pred_fallthru
      _
    // Predicated region
    $region18: #{generator_forward.1} parent=1 // pred_check
      _
    $region19: #{generator_forward.1} parent=1 // pred_check_branch
      %35 = sbr.rel (0) target = $region21
    $region20: #{generator_forward.1} parent=1 // pred_region
      %s37 = ssub.s32 1024, 1024
      %38 = vsyncadd [#allocation5], %s37
      %s39 = sshll.u32 [#allocation4], 4
      %s40 = int_to_ptr.vmem [resolvable:$true] %s39
      %45 = dma.hbm_to_vmem [thread:$0]  %s4, 1024, %s40, [#allocation5], 64, 64, 4
    $region21: #{generator_forward.1} parent=1 // pred_fallthru
      _
    // Predicated region
    $region22: #{generator_forward.1} parent=1 // pred_check
      _
    $region23: #{generator_forward.1} parent=1 // pred_check_branch
      %47 = sbr.rel (0) target = $region25
    $region24: #{generator_forward.1} parent=1 // pred_region
      _
    $region25: #{generator_forward.1} parent=1 // pred_fallthru
      _
    // Predicated region
    $region26: #{generator_forward.1} parent=1 // pred_check
      _
    $region27: #{generator_forward.1} parent=1 // pred_check_branch
      %49 = sbr.rel (0) target = $region29
    $region28: #{generator_forward.1} parent=1 // pred_region
      _
    $region29: #{generator_forward.1} parent=1 // pred_fallthru
      _
    // Predicated region
    $region30: #{generator_forward.1} parent=1 // pred_check
      _
    $region31: #{generator_forward.1} parent=1 // pred_check_branch
      %51 = sbr.rel (0) target = $region33
    $region32: #{generator_forward.1} parent=1 // pred_region
      %s53 = ssub.s32 1024, 1024
      %54 = vsyncadd [#allocation5], %s53
      %s55 = sshll.u32 [#allocation6], 4
      %s56 = int_to_ptr.vmem [resolvable:$true] %s55
      %61 = dma.hbm_to_vmem [thread:$0]  %s7, 1024, %s56, [#allocation5], 64, 64, 4
    $region33: #{generator_forward.1} parent=1 // pred_fallthru
      _
    // Predicated region
    $region34: #{generator_forward.1} parent=1 // pred_check
      _
    $region35: #{generator_forward.1} parent=1 // pred_check_branch
      %63 = sbr.rel (0) target = $region37
    $region36: #{generator_forward.1} parent=1 // pred_region
      _
    $region37: #{generator_forward.1} parent=1 // pred_fallthru
      _
    // Predicated region
    $region38: #{generator_forward.1} parent=1 // pred_check
      _
    $region39: #{generator_forward.1} parent=1 // pred_check_branch
      %65 = sbr.rel (0) target = $region41
    $region40: #{generator_forward.1} parent=1 // pred_region
      %66 = dma.done [#allocation3], 1024
    $region41: #{generator_forward.1} parent=1 // pred_fallthru
      _
    // Predicated region
    $region42: #{generator_forward.1} parent=1 // pred_check
      _
    $region43: #{generator_forward.1} parent=1 // pred_check_branch
      %68 = sbr.rel (0) target = $region45
    $region44: #{generator_forward.1} parent=1 // pred_region
      %69 = dma.done [#allocation5], 1024
    $region45: #{generator_forward.1} parent=1 // pred_fallthru
      _
    // Predicated region
    $region46: #{generator_forward.1} parent=1 // pred_check
      _
    $region47: #{generator_forward.1} parent=1 // pred_check_branch
      %71 = sbr.rel (0) target = $region49
    $region48: #{generator_forward.1} parent=1 // pred_region
      %72 = dma.done [#allocation5], 1024
    $region49: #{generator_forward.1} parent=1 // pred_fallthru
      _
    %v74 = vlaneseq
    %v75 = vshrl.u32 %v74, 7
    %v76 = vadd.s32 %v75, 8
    %vm77 = vcmp.lt.s32.totalorder %v75, 8
    %vm78 = vcmp.lt.s32.totalorder %v76, 8
    %v79 = vld [vmem:[%s0] sm:$0xf]
    %v80 = vld [vmem:[%s0 + $0x4] sm:$0xf]
    %v81 = vld [vmem:[#allocation2] sm:$0xf]
    %v82 = vld [vmem:[#allocation2 + $0x4] sm:$0xf]
    %v83 = vld [vmem:[#allocation2 + $0x8] sm:$0xf]
    %v84 = vld [vmem:[#allocation2 + $0xc] sm:$0xf]
    %v85 = vld [vmem:[#allocation2 + $0x10] sm:$0xf]
    %v86 = vld [vmem:[#allocation2 + $0x14] sm:$0xf]
    %v87 = vld [vmem:[#allocation2 + $0x18] sm:$0xf]
    %v88 = vld [vmem:[#allocation2 + $0x1c] sm:$0xf]
    %v89 = vld [vmem:[#allocation2 + $0x20] sm:$0xf]
    %v90 = vld [vmem:[#allocation2 + $0x24] sm:$0xf]
    %v91 = vld [vmem:[#allocation2 + $0x28] sm:$0xf]
    %v92 = vld [vmem:[#allocation2 + $0x2c] sm:$0xf]
    %v93 = vld [vmem:[#allocation2 + $0x30] sm:$0xf]
    %v94 = vld [vmem:[#allocation2 + $0x34] sm:$0xf]
    %v95 = vld [vmem:[#allocation2 + $0x38] sm:$0xf]
    %v96 = vld [vmem:[#allocation2 + $0x3c] sm:$0xf]
    %v99 = vunpack.c.l.b16 %v79
    %v100 = vunpack.c.l.b16 %v80
    %v101 = vpack.c.b16 %v100, %v99
    %v119 = vunpack.c.l.b16 %v81
    %v120 = vunpack.c.l.b16 %v82
    %v121 = vunpack.c.l.b16 %v83
    %v122 = vunpack.c.l.b16 %v84
    %v123 = vunpack.c.l.b16 %v85
    %v124 = vunpack.c.l.b16 %v86
    %v125 = vunpack.c.l.b16 %v87
    %v126 = vunpack.c.l.b16 %v88
    %v127 = vunpack.c.l.b16 %v89
    %v128 = vunpack.c.l.b16 %v90
    %v129 = vunpack.c.l.b16 %v91
    %v130 = vunpack.c.l.b16 %v92
    %v131 = vunpack.c.l.b16 %v93
    %v132 = vunpack.c.l.b16 %v94
    %v133 = vunpack.c.l.b16 %v95
    %v134 = vunpack.c.l.b16 %v96
    %v135 = vpack.c.b16 %v120, %v119
    %v136 = vpack.c.b16 %v122, %v121
    %v137 = vpack.c.b16 %v124, %v123
    %v138 = vpack.c.b16 %v126, %v125
    %v139 = vpack.c.b16 %v128, %v127
    %v140 = vpack.c.b16 %v130, %v129
    %v141 = vpack.c.b16 %v132, %v131
    %v142 = vpack.c.b16 %v134, %v133
    %151 = vmatprep.subr.bf16.mxu0 0
    %152 = vmatpush1.bf16.msra.mxu0 %v142
    %153 = vmatprep.subr.bf16.mxu0 0
    %154 = vmatpush1.bf16.msra.mxu0 %v141
    %155 = vmatprep.subr.bf16.mxu0 0
    %156 = vmatpush1.bf16.msra.mxu0 %v140
    %157 = vmatprep.subr.bf16.mxu0 0
    %158 = vmatpush1.bf16.msra.mxu0 %v139
    %159 = vmatprep.subr.bf16.mxu0 0
    %160 = vmatpush1.bf16.msra.mxu0 %v138
    %161 = vmatprep.subr.bf16.mxu0 0
    %162 = vmatpush1.bf16.msra.mxu0 %v137
    %163 = vmatprep.subr.bf16.mxu0 0
    %164 = vmatpush1.bf16.msra.mxu0 %v136
    %165 = vmatprep.subr.bf16.mxu0 0
    %166 = vmatpush1.bf16.msra.mxu0 %v135
    %167 = vmatprep.subr.bf16.mxu0 0
    %168 = vmatpush2.bf16.msra.mxu0 0
    %169 = vmatprep.subr.bf16.mxu0 0
    %170 = vmatpush2.bf16.msra.mxu0 0
    %171 = vmatprep.subr.bf16.mxu0 0
    %172 = vmatpush2.bf16.msra.mxu0 0
    %173 = vmatprep.subr.bf16.mxu0 0
    %174 = vmatpush2.bf16.msra.mxu0 0
    %175 = vmatprep.subr.bf16.mxu0 0
    %176 = vmatpush2.bf16.msra.mxu0 0
    %177 = vmatprep.subr.bf16.mxu0 0
    %178 = vmatpush2.bf16.msra.mxu0 0
    %179 = vmatprep.subr.bf16.mxu0 0
    %180 = vmatpush2.bf16.msra.mxu0 0
    %181 = vmatprep.subr.bf16.mxu0 0
    %182 = vmatpush2.bf16.msra.mxu0 0
    %183 = vmatprep.mubr.bf16.mxu0 0
    %184 = vmatmul.mubr.bf16.gmra.mxu0 %v101
    %v185 = vpop.f32.mrf.mxu0
    %v186 = vadd.f32 0.0, %v185
    %v187 = vpop.f32.mrf.mxu0
    %v188 = vpop.f32.mrf.mxu0
    %v189 = vadd.f32 0.0, %v188
    %v190 = vpop.f32.mrf.mxu0
    %191 = vdwg.mxu0
    %v192 = vld [vmem:[%s2] sm:$0x1]
    %v193 = vld [vmem:[%s3] sm:$0x1]
    %v194 = vadd.f32 %v186, %v189
    %v195 = vrot.slane %v194, 4
    %v196 = vadd.f32 %v194, %v195
    %v197 = vrot.slane %v196, 2
    %v198 = vadd.f32 %v196, %v197
    %v199 = vrot.slane %v198, 1
    %v200 = vadd.f32 %v198, %v199
    %v201 = vmul.f32 %v186, %v186
    %v202 = vmul.f32 %v189, %v189
    %v203 = vadd.f32 %v201, %v202
    %v204 = vrot.slane %v203, 4
    %v205 = vadd.f32 %v203, %v204
    %v206 = vrot.slane %v205, 2
    %v207 = vadd.f32 %v205, %v206
    %v208 = vrot.slane %v207, 1
    %v209 = vadd.f32 %v207, %v208
    %v210 = vmul.f32 %v200, 0.125
    %v211 = vmul.f32 %v209, 0.125
    %v212 = vmul.f32 %v210, %v210
    %v213 = vsub.f32 %v211, %v212
    %v214 = vadd.f32 %v213, 1e-05
    %v215 = vrsqrt.pop %v214
    %v216 = vmul.f32 %v215, %v192
    %v217 = vmul.f32 %v210, %v216
    %v218 = vsub.f32 %v193, %v217
    %v219 = vlaneseq
    %v220 = vshrl.u32 %v219, 7
    %v221 = vsub.s32 0, %v220
    %v222 = vrot.slane %v216, %v221
    %v223 = vmul.f32 %v186, %v222
    %v224 = vmul.f32 %v189, %v222
    %v226 = vlaneseq
    %v227 = vshrl.u32 %v226, 7
    %v228 = vsub.s32 0, %v227
    %v229 = vrot.slane %v218, %v228
    %v231 = vadd.f32 %v223, %v229
    %v232 = vadd.f32 %v224, %v229
    %v233 = vmax.f32 %v231, 0.0
    %v234 = vmax.f32 %v232, 0.0
    %v235 = vsel %vm77, 1, 0
    %v236 = vsel %vm78, 1, 0
    %vm237 = vcmp.eq.s32.totalorder %v235, 1
    %vm238 = vcmp.eq.s32.totalorder %v236, 1
    %v239 = vsel %vm237, %v233, 0.0
    %v240 = vsel %vm238, %v234, 0.0
    %v241 = vpack.c.bf16 %v240, %v239
    %v242 = vld [vmem:[#allocation4] sm:$0xf]
    %v243 = vld [vmem:[#allocation4 + $0x4] sm:$0xf]
    %v244 = vld [vmem:[#allocation4 + $0x8] sm:$0xf]
    %v245 = vld [vmem:[#allocation4 + $0xc] sm:$0xf]
    %v246 = vld [vmem:[#allocation4 + $0x10] sm:$0xf]
    %v247 = vld [vmem:[#allocation4 + $0x14] sm:$0xf]
    %v248 = vld [vmem:[#allocation4 + $0x18] sm:$0xf]
    %v249 = vld [vmem:[#allocation4 + $0x1c] sm:$0xf]
    %v250 = vld [vmem:[#allocation4 + $0x20] sm:$0xf]
    %v251 = vld [vmem:[#allocation4 + $0x24] sm:$0xf]
    %v252 = vld [vmem:[#allocation4 + $0x28] sm:$0xf]
    %v253 = vld [vmem:[#allocation4 + $0x2c] sm:$0xf]
    %v254 = vld [vmem:[#allocation4 + $0x30] sm:$0xf]
    %v255 = vld [vmem:[#allocation4 + $0x34] sm:$0xf]
    %v256 = vld [vmem:[#allocation4 + $0x38] sm:$0xf]
    %v257 = vld [vmem:[#allocation4 + $0x3c] sm:$0xf]
    %v274 = vunpack.c.l.b16 %v242
    %v275 = vunpack.c.l.b16 %v243
    %v276 = vunpack.c.l.b16 %v244
    %v277 = vunpack.c.l.b16 %v245
    %v278 = vunpack.c.l.b16 %v246
    %v279 = vunpack.c.l.b16 %v247
    %v280 = vunpack.c.l.b16 %v248
    %v281 = vunpack.c.l.b16 %v249
    %v282 = vunpack.c.l.b16 %v250
    %v283 = vunpack.c.l.b16 %v251
    %v284 = vunpack.c.l.b16 %v252
    %v285 = vunpack.c.l.b16 %v253
    %v286 = vunpack.c.l.b16 %v254
    %v287 = vunpack.c.l.b16 %v255
    %v288 = vunpack.c.l.b16 %v256
    %v289 = vunpack.c.l.b16 %v257
    %v290 = vpack.c.b16 %v275, %v274
    %v291 = vpack.c.b16 %v277, %v276
    %v292 = vpack.c.b16 %v279, %v278
    %v293 = vpack.c.b16 %v281, %v280
    %v294 = vpack.c.b16 %v283, %v282
    %v295 = vpack.c.b16 %v285, %v284
    %v296 = vpack.c.b16 %v287, %v286
    %v297 = vpack.c.b16 %v289, %v288
    %306 = vmatprep.subr.bf16.mxu0 0
    %307 = vmatpush1.bf16.msra.mxu0 %v297
    %308 = vmatprep.subr.bf16.mxu0 0
    %309 = vmatpush1.bf16.msra.mxu0 %v296
    %310 = vmatprep.subr.bf16.mxu0 0
    %311 = vmatpush1.bf16.msra.mxu0 %v295
    %312 = vmatprep.subr.bf16.mxu0 0
    %313 = vmatpush1.bf16.msra.mxu0 %v294
    %314 = vmatprep.subr.bf16.mxu0 0
    %315 = vmatpush1.bf16.msra.mxu0 %v293
    %316 = vmatprep.subr.bf16.mxu0 0
    %317 = vmatpush1.bf16.msra.mxu0 %v292
    %318 = vmatprep.subr.bf16.mxu0 0
    %319 = vmatpush1.bf16.msra.mxu0 %v291
    %320 = vmatprep.subr.bf16.mxu0 0
    %321 = vmatpush1.bf16.msra.mxu0 %v290
    %322 = vmatprep.subr.bf16.mxu0 0
    %323 = vmatpush2.bf16.msra.mxu0 0
    %324 = vmatprep.subr.bf16.mxu0 0
    %325 = vmatpush2.bf16.msra.mxu0 0
    %326 = vmatprep.subr.bf16.mxu0 0
    %327 = vmatpush2.bf16.msra.mxu0 0
    %328 = vmatprep.subr.bf16.mxu0 0
    %329 = vmatpush2.bf16.msra.mxu0 0
    %330 = vmatprep.subr.bf16.mxu0 0
    %331 = vmatpush2.bf16.msra.mxu0 0
    %332 = vmatprep.subr.bf16.mxu0 0
    %333 = vmatpush2.bf16.msra.mxu0 0
    %334 = vmatprep.subr.bf16.mxu0 0
    %335 = vmatpush2.bf16.msra.mxu0 0
    %336 = vmatprep.subr.bf16.mxu0 0
    %337 = vmatpush2.bf16.msra.mxu0 0
    %338 = vmatprep.mubr.bf16.mxu0 0
    %339 = vmatmul.mubr.bf16.gmra.mxu0 %v241
    %v340 = vpop.f32.mrf.mxu0
    %v341 = vadd.f32 0.0, %v340
    %v342 = vpop.f32.mrf.mxu0
    %v343 = vpop.f32.mrf.mxu0
    %v344 = vadd.f32 0.0, %v343
    %v345 = vpop.f32.mrf.mxu0
    %346 = vdwg.mxu0
    %v347 = vld [vmem:[%s5] sm:$0x1]
    %v348 = vld [vmem:[%s6] sm:$0x1]
    %v349 = vadd.f32 %v341, %v344
    %v350 = vrot.slane %v349, 4
    %v351 = vadd.f32 %v349, %v350
    %v352 = vrot.slane %v351, 2
    %v353 = vadd.f32 %v351, %v352
    %v354 = vrot.slane %v353, 1
    %v355 = vadd.f32 %v353, %v354
    %v356 = vmul.f32 %v341, %v341
    %v357 = vmul.f32 %v344, %v344
    %v358 = vadd.f32 %v356, %v357
    %v359 = vrot.slane %v358, 4
    %v360 = vadd.f32 %v358, %v359
    %v361 = vrot.slane %v360, 2
    %v362 = vadd.f32 %v360, %v361
    %v363 = vrot.slane %v362, 1
    %v364 = vadd.f32 %v362, %v363
    %v365 = vmul.f32 %v355, 0.125
    %v366 = vmul.f32 %v364, 0.125
    %v367 = vmul.f32 %v365, %v365
    %v368 = vsub.f32 %v366, %v367
    %v369 = vadd.f32 %v368, 1e-05
    %v370 = vrsqrt.pop %v369
    %v371 = vmul.f32 %v370, %v347
    %v372 = vmul.f32 %v365, %v371
    %v373 = vsub.f32 %v348, %v372
    %v374 = vlaneseq
    %v375 = vshrl.u32 %v374, 7
    %v376 = vsub.s32 0, %v375
    %v377 = vrot.slane %v371, %v376
    %v378 = vmul.f32 %v341, %v377
    %v379 = vmul.f32 %v344, %v377
    %v381 = vlaneseq
    %v382 = vshrl.u32 %v381, 7
    %v383 = vsub.s32 0, %v382
    %v384 = vrot.slane %v373, %v383
    %v386 = vadd.f32 %v378, %v384
    %v387 = vadd.f32 %v379, %v384
    %v388 = vmax.f32 %v386, 0.0
    %v389 = vmax.f32 %v387, 0.0
    %v390 = vsel %vm237, %v388, 0.0
    %v391 = vsel %vm238, %v389, 0.0
    %v392 = vpack.c.bf16 %v391, %v390
    %v393 = vld [vmem:[#allocation6] sm:$0xf]
    %v394 = vld [vmem:[#allocation6 + $0x4] sm:$0xf]
    %v395 = vld [vmem:[#allocation6 + $0x8] sm:$0xf]
    %v396 = vld [vmem:[#allocation6 + $0xc] sm:$0xf]
    %v397 = vld [vmem:[#allocation6 + $0x10] sm:$0xf]
    %v398 = vld [vmem:[#allocation6 + $0x14] sm:$0xf]
    %v399 = vld [vmem:[#allocation6 + $0x18] sm:$0xf]
    %v400 = vld [vmem:[#allocation6 + $0x1c] sm:$0xf]
    %v401 = vld [vmem:[#allocation6 + $0x20] sm:$0xf]
    %v402 = vld [vmem:[#allocation6 + $0x24] sm:$0xf]
    %v403 = vld [vmem:[#allocation6 + $0x28] sm:$0xf]
    %v404 = vld [vmem:[#allocation6 + $0x2c] sm:$0xf]
    %v405 = vld [vmem:[#allocation6 + $0x30] sm:$0xf]
    %v406 = vld [vmem:[#allocation6 + $0x34] sm:$0xf]
    %v407 = vld [vmem:[#allocation6 + $0x38] sm:$0xf]
    %v408 = vld [vmem:[#allocation6 + $0x3c] sm:$0xf]
    %v409 = vld [vmem:[%s8] sm:$0x1]
    %v411 = vlaneseq
    %v412 = vshrl.u32 %v411, 7
    %v413 = vsub.s32 0, %v412
    %v414 = vrot.slane %v409, %v413
    %v432 = vunpack.c.l.b16 %v393
    %v433 = vunpack.c.l.b16 %v394
    %v434 = vunpack.c.l.b16 %v395
    %v435 = vunpack.c.l.b16 %v396
    %v436 = vunpack.c.l.b16 %v397
    %v437 = vunpack.c.l.b16 %v398
    %v438 = vunpack.c.l.b16 %v399
    %v439 = vunpack.c.l.b16 %v400
    %v440 = vunpack.c.l.b16 %v401
    %v441 = vunpack.c.l.b16 %v402
    %v442 = vunpack.c.l.b16 %v403
    %v443 = vunpack.c.l.b16 %v404
    %v444 = vunpack.c.l.b16 %v405
    %v445 = vunpack.c.l.b16 %v406
    %v446 = vunpack.c.l.b16 %v407
    %v447 = vunpack.c.l.b16 %v408
    %v448 = vpack.c.b16 %v433, %v432
    %v449 = vpack.c.b16 %v435, %v434
    %v450 = vpack.c.b16 %v437, %v436
    %v451 = vpack.c.b16 %v439, %v438
    %v452 = vpack.c.b16 %v441, %v440
    %v453 = vpack.c.b16 %v443, %v442
    %v454 = vpack.c.b16 %v445, %v444
    %v455 = vpack.c.b16 %v447, %v446
    %464 = vmatprep.subr.bf16.mxu0 0
    %465 = vmatpush1.bf16.msra.mxu0 %v455
    %466 = vmatprep.subr.bf16.mxu0 0
    %467 = vmatpush1.bf16.msra.mxu0 %v454
    %468 = vmatprep.subr.bf16.mxu0 0
    %469 = vmatpush1.bf16.msra.mxu0 %v453
    %470 = vmatprep.subr.bf16.mxu0 0
    %471 = vmatpush1.bf16.msra.mxu0 %v452
    %472 = vmatprep.subr.bf16.mxu0 0
    %473 = vmatpush1.bf16.msra.mxu0 %v451
    %474 = vmatprep.subr.bf16.mxu0 0
    %475 = vmatpush1.bf16.msra.mxu0 %v450
    %476 = vmatprep.subr.bf16.mxu0 0
    %477 = vmatpush1.bf16.msra.mxu0 %v449
    %478 = vmatprep.subr.bf16.mxu0 0
    %479 = vmatpush1.bf16.msra.mxu0 %v448
    %480 = vmatprep.subr.bf16.mxu0 0
    %481 = vmatpush2.bf16.msra.mxu0 0
    %482 = vmatprep.subr.bf16.mxu0 0
    %483 = vmatpush2.bf16.msra.mxu0 0
    %484 = vmatprep.subr.bf16.mxu0 0
    %485 = vmatpush2.bf16.msra.mxu0 0
    %486 = vmatprep.subr.bf16.mxu0 0
    %487 = vmatpush2.bf16.msra.mxu0 0
    %488 = vmatprep.subr.bf16.mxu0 0
    %489 = vmatpush2.bf16.msra.mxu0 0
    %490 = vmatprep.subr.bf16.mxu0 0
    %491 = vmatpush2.bf16.msra.mxu0 0
    %492 = vmatprep.subr.bf16.mxu0 0
    %493 = vmatpush2.bf16.msra.mxu0 0
    %494 = vmatprep.subr.bf16.mxu0 0
    %495 = vmatpush2.bf16.msra.mxu0 0
    %496 = vmatprep.mubr.bf16.mxu0 0
    %497 = vmatmul.mubr.bf16.gmra.mxu0 %v392
    %v498 = vpop.f32.mrf.mxu0
    %v499 = vadd.f32 %v414, %v498
    %v500 = vpop.f32.mrf.mxu0
    %v501 = vpop.f32.mrf.mxu0
    %v502 = vadd.f32 %v414, %v501
    %v503 = vpop.f32.mrf.mxu0
    %504 = vdwg.mxu0
    %505 = vst [vmem:[%s9] sm:$0xff] %v499
    %506 = vst [vmem:[%s9 + $0x8] sm:$0xff] %v502
    // Predicated region
    $region50: #{generator_forward.1} parent=1 // pred_check
      _
    $region51: #{generator_forward.1} parent=1 // pred_check_branch
      %508 = sbr.rel (0) target = $region53
    $region52: #{generator_forward.1} parent=1 // pred_region
      _
    $region53: #{generator_forward.1} parent=1 // pred_fallthru
      _
    // Predicated region
    $region54: #{generator_forward.1} parent=1 // pred_check
      _
    $region55: #{generator_forward.1} parent=1 // pred_check_branch
      %510 = sbr.rel (0) target = $region57
    $region56: #{generator_forward.1} parent=1 // pred_region
      _
    $region57: #{generator_forward.1} parent=1 // pred_fallthru
      _
    %511 = vsyncpa [#allocation3], 1
    %512 = vsyncpa [#allocation5], 1

</llo_original>
